<compile_context>
chip_gen: v5e
topology: v5e:2x2
jax: 0.10.0
libtpu: 0.0.40
codegen_flags: <defaults>
</compile_context>

<pallas_src>
import jax
import jax.numpy as jnp
from jax.experimental import pallas as pl
from jax.experimental.pallas import tpu as pltpu

EMB_DIM = 64
DIST_DIM = 2
OUT_DIM = 2 * DIST_DIM
MIN_STD = 0.01
LN_EPS = 1e-5


def output_model_kernel(x_ref, w1_ref, b1_ref, w2_ref, b2_ref, w34_ref, b34_ref,
                        o_ref):
    # Upcast inside the kernel; input arrives in its native dtype.
    x = x_ref[...].astype(jnp.float32)

    # LayerNorm over the feature (lane) axis; gamma/beta are folded into w1/b1.
    mu = jnp.mean(x, axis=-1, keepdims=True)
    xc = x - mu
    var = jnp.mean(xc * xc, axis=-1, keepdims=True)
    h = xc * jax.lax.rsqrt(var + LN_EPS)

    # Hidden layer 1: bf16 MXU operands, f32 accumulation, f32 elementwise.
    h = jnp.dot(h.astype(jnp.bfloat16), w1_ref[...],
                preferred_element_type=jnp.float32) + b1_ref[...]
    h = jnp.maximum(h, 0.0)

    # Hidden layer 2.
    h = jnp.dot(h.astype(jnp.bfloat16), w2_ref[...],
                preferred_element_type=jnp.float32) + b2_ref[...]
    h = jnp.maximum(h, 0.0)

    # Output projection.  Columns 0:2 carry the out_std/out_mean-folded mean;
    # columns 2:4 have zero weights and the (std * out_std) constant in the
    # bias, so a single dot + single store produces the full [mean, std] block.
    out = jnp.dot(h.astype(jnp.bfloat16), w34_ref[...],
                  preferred_element_type=jnp.float32) + b34_ref[...]
    o_ref[...] = out.astype(o_ref.dtype)


def _round_up(x, m):
    return ((x + m - 1) // m) * m


def output_model_forward(x, params, *, tile_m=2048):
    """x: (..., EMB_DIM), any float dtype. Returns (..., 2*DIST_DIM) float32."""
    start_shape = x.shape[:-1]
    x2 = x.reshape((-1, EMB_DIM))          # keep native dtype (f32 or bf16)
    n = x2.shape[0]

    (gamma, beta, w1, b1, w2, b2, w3, b3, out_std, out_mean, std_vec) = params

    # Free algebraic foldings, done once outside the kernel:
    #   LayerNorm affine -> first linear, output affine -> last linear,
    #   std half of the output -> zero weight columns + bias constant.
    w1f = w1 * gamma.reshape(EMB_DIM, 1)
    b1f = (beta @ w1 + b1).astype(jnp.float32)
    w3f = w3 * out_std
    b3f = b3 * out_std + out_mean
    std_const = (std_vec * out_std).astype(jnp.float32)        # (1, DIST_DIM)

    w34 = jnp.concatenate([w3f, jnp.zeros((EMB_DIM, DIST_DIM), w3f.dtype)],
                          axis=1)                               # (64, 4)
    b34 = jnp.concatenate([b3f, std_const], axis=1).astype(jnp.float32)  # (1, 4)

    # bf16 MXU operands (accumulation stays f32 inside the kernel).
    w1b = w1f.astype(jnp.bfloat16)
    w2b = w2.astype(jnp.bfloat16)
    w34b = w34.astype(jnp.bfloat16)
    b2f = b2.astype(jnp.float32)

    # Tile selection: 8-aligned, bounded by the row count; split into >=2 grid
    # steps when possible so the "parallel" axis shards across v7x's 2 TCs.
    n8 = _round_up(max(n, 1), 8)
    tile_m = max(8, min(tile_m, n8))
    if pl.cdiv(n, tile_m) == 1 and n8 >= 16:
        tile_m = _round_up(pl.cdiv(n8, 2), 8)
    grid = pl.cdiv(n, tile_m)               # ragged last block handled by Pallas

    full = lambda shape: pl.BlockSpec(shape, lambda i: (0, 0))

    out = pl.pallas_call(
        output_model_kernel,
        out_shape=jax.ShapeDtypeStruct((n, OUT_DIM), jnp.float32),
        grid_spec=pltpu.PrefetchScalarGridSpec(
            num_scalar_prefetch=0,
            grid=(grid,),
            in_specs=[
                pl.BlockSpec((tile_m, EMB_DIM), lambda i: (i, 0)),  # x rows
                full((EMB_DIM, EMB_DIM)),                           # w1 (LN-folded, bf16)
                full((1, EMB_DIM)),                                 # b1 (LN-folded)
                full((EMB_DIM, EMB_DIM)),                           # w2 (bf16)
                full((1, EMB_DIM)),                                 # b2
                full((EMB_DIM, OUT_DIM)),                           # w3 | zeros (bf16)
                full((1, OUT_DIM)),                                 # b3 | std const
            ],
            out_specs=pl.BlockSpec((tile_m, OUT_DIM), lambda i: (i, 0)),
        ),
        compiler_params=pltpu.CompilerParams(
            dimension_semantics=("parallel",)),
    )(x2, w1b, b1f, w2b, b2f, w34b, b34)

    return out.reshape((*start_shape, OUT_DIM))


def make_params(key):
    ks = jax.random.split(key, 8)
    # Weights stored as (in, out) so the kernel does x @ W (== x @ W_torch.T).
    gamma = jnp.ones((1, EMB_DIM), jnp.float32)
    beta = jnp.zeros((1, EMB_DIM), jnp.float32)
    w1 = jax.random.normal(ks[0], (EMB_DIM, EMB_DIM), jnp.float32) * 0.05
    b1 = jax.random.normal(ks[1], (1, EMB_DIM), jnp.float32) * 0.05
    w2 = jax.random.normal(ks[2], (EMB_DIM, EMB_DIM), jnp.float32) * 0.05
    b2 = jax.random.normal(ks[3], (1, EMB_DIM), jnp.float32) * 0.05
    w3 = jax.random.normal(ks[4], (EMB_DIM, DIST_DIM), jnp.float32) * 0.05
    b3 = jax.random.normal(ks[5], (1, DIST_DIM), jnp.float32) * 0.05
    log_std = jax.random.normal(ks[6], (1, DIST_DIM), jnp.float32) * 0.1
    out_std = jnp.ones((1, DIST_DIM), jnp.float32)    # default: ones
    out_mean = jnp.zeros((1, DIST_DIM), jnp.float32)  # default: zeros
    std_vec = MIN_STD + jnp.exp(log_std)              # self.std (wa_std=False)
    return (gamma, beta, w1, b1, w2, b2, w3, b3, out_std, out_mean, std_vec)


def reference_forward(x, params):
    (gamma, beta, w1, b1, w2, b2, w3, b3, out_std, out_mean, std_vec) = params
    start_shape = x.shape[:-1]
    h = x.reshape((-1, EMB_DIM)).astype(jnp.float32)
    mu = jnp.mean(h, axis=-1, keepdims=True)
    var = jnp.mean((h - mu) ** 2, axis=-1, keepdims=True)
    h = (h - mu) / jnp.sqrt(var + LN_EPS) * gamma + beta
    h = jnp.maximum(h @ w1 + b1, 0.0)
    h = jnp.maximum(h @ w2 + b2, 0.0)
    out = h @ w3 + b3
    mean = out * out_std + out_mean
    std = jnp.zeros_like(mean) + std_vec * out_std
    return jnp.concatenate([mean, std], axis=-1).reshape((*start_shape, OUT_DIM))


if __name__ == "__main__":
    key = jax.random.PRNGKey(0)
    k_x, k_x2, k_p = jax.random.split(key, 3)
    params = make_params(k_p)

    # agent_decoder_state: (num_modes=2, seq=4, batch=8, emb_dim=64) -> 64 rows
    # (exercises the >=2-step grid split: two exact 32-row tiles).
    x = jax.random.normal(k_x, (2, 4, 8, EMB_DIM), jnp.float32)
    out = jax.block_until_ready(output_model_forward(x, params))
    ref = reference_forward(x, params)
    assert out.shape == (2, 4, 8, OUT_DIM), out.shape
    assert jnp.allclose(out, ref, atol=2e-2, rtol=2e-2), float(
        jnp.max(jnp.abs(out - ref)))

    # Ragged case: 3*5*7 = 105 rows -> tile_m=56, grid=2, masked last block.
    x_r = jax.random.normal(k_x2, (3, 5, 7, EMB_DIM), jnp.float32)
    out_r = jax.block_until_ready(output_model_forward(x_r, params))
    ref_r = reference_forward(x_r, params)
    assert out_r.shape == (3, 5, 7, OUT_DIM), out_r.shape
    assert jnp.allclose(out_r, ref_r, atol=2e-2, rtol=2e-2), float(
        jnp.max(jnp.abs(out_r - ref_r)))

    print("KERNEL_OK")
</pallas_src>

<mosaic_0001>
module attributes {stable_mosaic.version = 11 : i64} {
  func.func @output_model_kernel(%arg0: i32, %arg1: memref<32x64xf32, #tpu.memory_space<vmem>>, %arg2: memref<64x64xbf16, #tpu.memory_space<vmem>>, %arg3: memref<1x64xf32, #tpu.memory_space<vmem>>, %arg4: memref<64x64xbf16, #tpu.memory_space<vmem>>, %arg5: memref<1x64xf32, #tpu.memory_space<vmem>>, %arg6: memref<64x4xbf16, #tpu.memory_space<vmem>>, %arg7: memref<1x4xf32, #tpu.memory_space<vmem>>, %arg8: memref<32x4xf32, #tpu.memory_space<vmem>>) attributes {dimension_semantics = [#tpu.dimension_semantics<parallel>], iteration_bounds = array<i64: 2>, scalar_prefetch = 0 : i64, scratch_operands = 0 : i64, tpu.core_type = #tpu.core_type<tc>, window_params = [{transform_indices = @transform_0, window_bounds = array<i64: 32, 64>}, {pipeline_mode = #tpu.pipeline_mode<synchronous>, transform_indices = @transform_1, window_bounds = array<i64: 64, 64>}, {pipeline_mode = #tpu.pipeline_mode<synchronous>, transform_indices = @transform_2, window_bounds = array<i64: 1, 64>}, {pipeline_mode = #tpu.pipeline_mode<synchronous>, transform_indices = @transform_3, window_bounds = array<i64: 64, 64>}, {pipeline_mode = #tpu.pipeline_mode<synchronous>, transform_indices = @transform_4, window_bounds = array<i64: 1, 64>}, {pipeline_mode = #tpu.pipeline_mode<synchronous>, transform_indices = @transform_5, window_bounds = array<i64: 64, 4>}, {pipeline_mode = #tpu.pipeline_mode<synchronous>, transform_indices = @transform_6, window_bounds = array<i64: 1, 4>}, {transform_indices = @transform_7, window_bounds = array<i64: 32, 4>}]} {
    %c0 = arith.constant 0 : index
    %c0_0 = arith.constant 0 : index
    %0 = vector.load %arg1[%c0, %c0_0] : memref<32x64xf32, #tpu.memory_space<vmem>>, vector<32x64xf32>
    %cst = arith.constant dense<0.000000e+00> : vector<32xf32>
    %1 = vector.multi_reduction <add>, %0, %cst [1] : vector<32x64xf32> to vector<32xf32>
    %2 = vector.shape_cast %1 : vector<32xf32> to vector<32x1xf32>
    %cst_1 = arith.constant 6.400000e+01 : f32
    %3 = vector.broadcast %cst_1 : f32 to vector<32x1xf32>
    %4 = arith.divf %2, %3 : vector<32x1xf32>
    %5 = vector.broadcast %4 : vector<32x1xf32> to vector<32x64xf32>
    %6 = arith.subf %0, %5 : vector<32x64xf32>
    %7 = arith.mulf %6, %6 : vector<32x64xf32>
    %cst_2 = arith.constant dense<0.000000e+00> : vector<32xf32>
    %8 = vector.multi_reduction <add>, %7, %cst_2 [1] : vector<32x64xf32> to vector<32xf32>
    %9 = vector.shape_cast %8 : vector<32xf32> to vector<32x1xf32>
    %cst_3 = arith.constant 6.400000e+01 : f32
    %10 = vector.broadcast %cst_3 : f32 to vector<32x1xf32>
    %11 = arith.divf %9, %10 : vector<32x1xf32>
    %cst_4 = arith.constant 9.99999974E-6 : f32
    %12 = vector.broadcast %cst_4 : f32 to vector<32x1xf32>
    %13 = arith.addf %11, %12 : vector<32x1xf32>
    %14 = math.rsqrt %13 : vector<32x1xf32>
    %15 = vector.broadcast %14 : vector<32x1xf32> to vector<32x64xf32>
    %16 = arith.mulf %6, %15 : vector<32x64xf32>
    %17 = arith.truncf %16 : vector<32x64xf32> to vector<32x64xbf16>
    %c0_5 = arith.constant 0 : index
    %c0_6 = arith.constant 0 : index
    %18 = vector.load %arg2[%c0_5, %c0_6] : memref<64x64xbf16, #tpu.memory_space<vmem>>, vector<64x64xbf16>
    %cst_7 = arith.constant dense<0.000000e+00> : vector<32x64xf32>
    %19 = tpu.matmul %17, %18, %cst_7 {dimension_numbers = #tpu.dot_dimension_numbers<[1], [0], [0], [1], [0, 0, 1, 1], [], []>} : vector<32x64xbf16>, vector<64x64xbf16>, vector<32x64xf32> -> vector<32x64xf32>
    %c0_8 = arith.constant 0 : index
    %c0_9 = arith.constant 0 : index
    %20 = vector.load %arg3[%c0_8, %c0_9] : memref<1x64xf32, #tpu.memory_space<vmem>>, vector<1x64xf32>
    %21 = vector.broadcast %20 : vector<1x64xf32> to vector<32x64xf32>
    %22 = arith.addf %19, %21 : vector<32x64xf32>
    %cst_10 = arith.constant 0.000000e+00 : f32
    %23 = vector.broadcast %cst_10 : f32 to vector<32x64xf32>
    %24 = arith.maximumf %22, %23 : vector<32x64xf32>
    %25 = arith.truncf %24 : vector<32x64xf32> to vector<32x64xbf16>
    %c0_11 = arith.constant 0 : index
    %c0_12 = arith.constant 0 : index
    %26 = vector.load %arg4[%c0_11, %c0_12] : memref<64x64xbf16, #tpu.memory_space<vmem>>, vector<64x64xbf16>
    %cst_13 = arith.constant dense<0.000000e+00> : vector<32x64xf32>
    %27 = tpu.matmul %25, %26, %cst_13 {dimension_numbers = #tpu.dot_dimension_numbers<[1], [0], [0], [1], [0, 0, 1, 1], [], []>} : vector<32x64xbf16>, vector<64x64xbf16>, vector<32x64xf32> -> vector<32x64xf32>
    %c0_14 = arith.constant 0 : index
    %c0_15 = arith.constant 0 : index
    %28 = vector.load %arg5[%c0_14, %c0_15] : memref<1x64xf32, #tpu.memory_space<vmem>>, vector<1x64xf32>
    %29 = vector.broadcast %28 : vector<1x64xf32> to vector<32x64xf32>
    %30 = arith.addf %27, %29 : vector<32x64xf32>
    %cst_16 = arith.constant 0.000000e+00 : f32
    %31 = vector.broadcast %cst_16 : f32 to vector<32x64xf32>
    %32 = arith.maximumf %30, %31 : vector<32x64xf32>
    %33 = arith.truncf %32 : vector<32x64xf32> to vector<32x64xbf16>
    %c0_17 = arith.constant 0 : index
    %c0_18 = arith.constant 0 : index
    %34 = vector.load %arg6[%c0_17, %c0_18] : memref<64x4xbf16, #tpu.memory_space<vmem>>, vector<64x4xbf16>
    %cst_19 = arith.constant dense<0.000000e+00> : vector<32x4xf32>
    %35 = tpu.matmul %33, %34, %cst_19 {dimension_numbers = #tpu.dot_dimension_numbers<[1], [0], [0], [1], [0, 0, 1, 1], [], []>} : vector<32x64xbf16>, vector<64x4xbf16>, vector<32x4xf32> -> vector<32x4xf32>
    %c0_20 = arith.constant 0 : index
    %c0_21 = arith.constant 0 : index
    %36 = vector.load %arg7[%c0_20, %c0_21] : memref<1x4xf32, #tpu.memory_space<vmem>>, vector<1x4xf32>
    %37 = vector.broadcast %36 : vector<1x4xf32> to vector<32x4xf32>
    %38 = arith.addf %35, %37 : vector<32x4xf32>
    %c0_22 = arith.constant 0 : index
    %c0_23 = arith.constant 0 : index
    %39 = vector.load %arg8[%c0_22, %c0_23] : memref<32x4xf32, #tpu.memory_space<vmem>>, vector<32x4xf32>
    tpu.vector_store %arg8[%c0_22, %c0_23], %38 {strides = array<i32>} : memref<32x4xf32, #tpu.memory_space<vmem>>, vector<32x4xf32>,
    return
  }
  func.func @transform_0(%arg0: i32) -> (i32, i32) {
    %c0_i32 = arith.constant 0 : i32
    %c0_i32_0 = arith.constant 0 : i32
    return %arg0, %c0_i32 : i32, i32
  }
  func.func @transform_1(%arg0: i32) -> (i32, i32) {
    %c0_i32 = arith.constant 0 : i32
    %c0_i32_0 = arith.constant 0 : i32
    %c0_i32_1 = arith.constant 0 : i32
    return %c0_i32, %c0_i32_0 : i32, i32
  }
  func.func @transform_2(%arg0: i32) -> (i32, i32) {
    %c0_i32 = arith.constant 0 : i32
    %c0_i32_0 = arith.constant 0 : i32
    %c0_i32_1 = arith.constant 0 : i32
    return %c0_i32, %c0_i32_0 : i32, i32
  }
  func.func @transform_3(%arg0: i32) -> (i32, i32) {
    %c0_i32 = arith.constant 0 : i32
    %c0_i32_0 = arith.constant 0 : i32
    %c0_i32_1 = arith.constant 0 : i32
    return %c0_i32, %c0_i32_0 : i32, i32
  }
  func.func @transform_4(%arg0: i32) -> (i32, i32) {
    %c0_i32 = arith.constant 0 : i32
    %c0_i32_0 = arith.constant 0 : i32
    %c0_i32_1 = arith.constant 0 : i32
    return %c0_i32, %c0_i32_0 : i32, i32
  }
  func.func @transform_5(%arg0: i32) -> (i32, i32) {
    %c0_i32 = arith.constant 0 : i32
    %c0_i32_0 = arith.constant 0 : i32
    %c0_i32_1 = arith.constant 0 : i32
    return %c0_i32, %c0_i32_0 : i32, i32
  }
  func.func @transform_6(%arg0: i32) -> (i32, i32) {
    %c0_i32 = arith.constant 0 : i32
    %c0_i32_0 = arith.constant 0 : i32
    %c0_i32_1 = arith.constant 0 : i32
    return %c0_i32, %c0_i32_0 : i32, i32
  }
  func.func @transform_7(%arg0: i32) -> (i32, i32) {
    %c0_i32 = arith.constant 0 : i32
    %c0_i32_0 = arith.constant 0 : i32
    return %arg0, %c0_i32 : i32, i32
  }
}

</mosaic_0001>

<llo_original>
// kernel: tpu_custom_call.1
$region0: #{tpu_custom_call.1}
  #allocation0 [shape = 'u32[]', space=smem, size = 0x4, offset = 0x4, fixed_abs, tag = 'smem constant byte address 0x4 - core index']
  #allocation1 [shape = 'u32[72,128]{1,0:T(1,128)}', space=vmem, size = 0x9000, scoped, tag = 'internal scratch']
  %s0 = inlined_call_operand.hbm [shape: f32[64,64], index: 0, kind: input, shape index: {}]
  %s1 = inlined_call_operand.vmem [shape: bf16[64,64], index: 1, kind: input, shape index: {}]
  %s2 = inlined_call_operand.vmem [shape: f32[1,64], index: 2, kind: input, shape index: {}]
  %s3 = inlined_call_operand.hbm [shape: bf16[64,64], index: 3, kind: input, shape index: {}]
  %s4 = inlined_call_operand.vmem [shape: f32[1,64], index: 4, kind: input, shape index: {}]
  %s5 = inlined_call_operand.vmem [shape: bf16[64,4], index: 5, kind: input, shape index: {}]
  %s6 = inlined_call_operand.vmem [shape: f32[1,4], index: 6, kind: input, shape index: {}]
  %s7 = inlined_call_operand.vmem [shape: f32[64,4], index: 7, kind: output, shape index: {}]
  %s8 = sld [smem:[#allocation0]]
  $region69: #{tpu_custom_call.1} parent=0
    _
  %s10 = ssub.s32 1, %s8
  %s11 = scalar_select 0, %s10, %s8
  $region1: #{tpu_custom_call.1} parent=0
    #allocation2 [shape = 'u8[32768]{0}', space=vmem, size = 0x8000, scoped, tag = 'input window, operand 0']
    #allocation3 [shape = 's32[2]{0}', space=sflag, size = 0x8, scoped, tag = 'scoped memory for tpu_custom_call.1']
    #allocation4 [shape = 'u8[16384]{0}', space=vmem, size = 0x4000, scoped, tag = 'input window, operand 3, single buffered']
    #allocation5 [shape = 's32[1]{0}', space=sflag, size = 0x4, scoped, tag = 'scoped memory for tpu_custom_call.1']
    %12 = vsyncpa [#allocation3], 0
    %s13 = scalar_lea.sflag [#allocation3], 1
    %14 = vsyncpa %s13, 0
    %15 = vsyncpa [#allocation5], 0
    loop: start=0, step=1, limit=4
    $region2: #{tpu_custom_call.1} parent=1 // loop_pre_header
      _
    $region3: #{tpu_custom_call.1} parent=1 // loop_header
      %s17 = sphi 0, %s21
      %p18 = scmp.ge.s32.totalorder %s17, 4
      %s27 = sphi 0, %s29
      %s30 = sphi 0, %s27
      %s31 = sphi 0, %s30
      %s47 = sphi 0, %s31
      %s51 = sphi 0, %s51
      %s53 = sphi 0, %s51
      %s54 = sphi 0, %s53
      %s68 = sphi 0, %s54
      %s72 = sphi 0, %s72
      %s74 = sphi 0, %s72
      %s75 = sphi 0, %s74
      %s89 = sphi 0, %s75
      %s93 = sphi 0, %s93
      %s95 = sphi 0, %s93
      %s96 = sphi 0, %s95
      %s110 = sphi 0, %s96
      %s114 = sphi 0, %s114
      %s116 = sphi 0, %s114
      %s117 = sphi 0, %s116
      %s131 = sphi 0, %s117
      %s135 = sphi 0, %s135
      %s137 = sphi 0, %s135
      %s138 = sphi 0, %s137
      %s152 = sphi 0, %s138
      %s156 = sphi 0, %s156
      %s158 = sphi 0, %s156
      %s159 = sphi 0, %s158
      %s173 = sphi 0, %s159
      %s179 = sphi 0, %s181
      %s182 = sphi 0, %s179
      %s183 = sphi 0, %s182
      %s199 = sphi 0, %s183
    $region4: #{tpu_custom_call.1} parent=1 // loop_header_branch
      %20 = sbr.rel (%p18) target = $region8
    $region5: #{tpu_custom_call.1} parent=1 // loop_body
      %s22 = ssub.s32 %s17, 1
      %s23 = ssub.s32 %s17, 2
      %s24 = sadd.s32 %s17, 1
      %s25 = ssub.s32 %s17, %s24
      %p26 = scmp.eq.s32.totalorder %s25, 0
      %s28 = sadd.s32 %s27, 1
      %s29 = scalar_select %p26, %s27, %s28
      %p32 = pneg %p26
      %p33 = scmp.eq.s32.totalorder %s17, 1
      %p34 = por %p32, %p33
      %p35 = scmp.ne.s32.totalorder %s27, %s30
      %p36 = scmp.eq.s32.totalorder %s17, 0
      %p37 = por %p35, %p36
      %p38 = scmp.ne.s32.totalorder %s27, %s30
      %p39 = scmp.eq.s32.totalorder %s22, 1
      %p40 = por %p38, %p39
      %p41 = scmp.ne.s32.totalorder %s30, %s31
      %p42 = scmp.eq.s32.totalorder %s22, 0
      %p43 = por %p41, %p42
      %p44 = scmp.ne.s32.totalorder %s30, %s31
      %p45 = scmp.eq.s32.totalorder %s23, 1
      %p46 = por %p44, %p45
      %p48 = scmp.ne.s32.totalorder %s31, %s47
      %p49 = scmp.eq.s32.totalorder %s23, 0
      %p50 = por %p48, %p49
      %s52 = sadd.s32 %s51, 1
      %p55 = scmp.eq.s32.totalorder %s17, 1
      %p56 = scmp.ne.s32.totalorder %s51, %s53
      %p57 = scmp.eq.s32.totalorder %s17, 0
      %p58 = por %p56, %p57
      %p59 = scmp.ne.s32.totalorder %s51, %s53
      %p60 = scmp.eq.s32.totalorder %s22, 1
      %p61 = por %p59, %p60
      %p62 = scmp.ne.s32.totalorder %s53, %s54
      %p63 = scmp.eq.s32.totalorder %s22, 0
      %p64 = por %p62, %p63
      %p65 = scmp.ne.s32.totalorder %s53, %s54
      %p66 = scmp.eq.s32.totalorder %s23, 1
      %p67 = por %p65, %p66
      %p69 = scmp.ne.s32.totalorder %s54, %s68
      %p70 = scmp.eq.s32.totalorder %s23, 0
      %p71 = por %p69, %p70
      %s73 = sadd.s32 %s72, 1
      %p76 = scmp.eq.s32.totalorder %s17, 1
      %p77 = scmp.ne.s32.totalorder %s72, %s74
      %p78 = scmp.eq.s32.totalorder %s17, 0
      %p79 = por %p77, %p78
      %p80 = scmp.ne.s32.totalorder %s72, %s74
      %p81 = scmp.eq.s32.totalorder %s22, 1
      %p82 = por %p80, %p81
      %p83 = scmp.ne.s32.totalorder %s74, %s75
      %p84 = scmp.eq.s32.totalorder %s22, 0
      %p85 = por %p83, %p84
      %p86 = scmp.ne.s32.totalorder %s74, %s75
      %p87 = scmp.eq.s32.totalorder %s23, 1
      %p88 = por %p86, %p87
      %p90 = scmp.ne.s32.totalorder %s75, %s89
      %p91 = scmp.eq.s32.totalorder %s23, 0
      %p92 = por %p90, %p91
      %s94 = sadd.s32 %s93, 1
      %p97 = scmp.eq.s32.totalorder %s17, 1
      %p98 = scmp.ne.s32.totalorder %s93, %s95
      %p99 = scmp.eq.s32.totalorder %s17, 0
      %p100 = por %p98, %p99
      %p101 = scmp.ne.s32.totalorder %s93, %s95
      %p102 = scmp.eq.s32.totalorder %s22, 1
      %p103 = por %p101, %p102
      %p104 = scmp.ne.s32.totalorder %s95, %s96
      %p105 = scmp.eq.s32.totalorder %s22, 0
      %p106 = por %p104, %p105
      %p107 = scmp.ne.s32.totalorder %s95, %s96
      %p108 = scmp.eq.s32.totalorder %s23, 1
      %p109 = por %p107, %p108
      %p111 = scmp.ne.s32.totalorder %s96, %s110
      %p112 = scmp.eq.s32.totalorder %s23, 0
      %p113 = por %p111, %p112
      %s115 = sadd.s32 %s114, 1
      %p118 = scmp.eq.s32.totalorder %s17, 1
      %p119 = scmp.ne.s32.totalorder %s114, %s116
      %p120 = scmp.eq.s32.totalorder %s17, 0
      %p121 = por %p119, %p120
      %p122 = scmp.ne.s32.totalorder %s114, %s116
      %p123 = scmp.eq.s32.totalorder %s22, 1
      %p124 = por %p122, %p123
      %p125 = scmp.ne.s32.totalorder %s116, %s117
      %p126 = scmp.eq.s32.totalorder %s22, 0
      %p127 = por %p125, %p126
      %p128 = scmp.ne.s32.totalorder %s116, %s117
      %p129 = scmp.eq.s32.totalorder %s23, 1
      %p130 = por %p128, %p129
      %p132 = scmp.ne.s32.totalorder %s117, %s131
      %p133 = scmp.eq.s32.totalorder %s23, 0
      %p134 = por %p132, %p133
      %s136 = sadd.s32 %s135, 1
      %p139 = scmp.eq.s32.totalorder %s17, 1
      %p140 = scmp.ne.s32.totalorder %s135, %s137
      %p141 = scmp.eq.s32.totalorder %s17, 0
      %p142 = por %p140, %p141
      %p143 = scmp.ne.s32.totalorder %s135, %s137
      %p144 = scmp.eq.s32.totalorder %s22, 1
      %p145 = por %p143, %p144
      %p146 = scmp.ne.s32.totalorder %s137, %s138
      %p147 = scmp.eq.s32.totalorder %s22, 0
      %p148 = por %p146, %p147
      %p149 = scmp.ne.s32.totalorder %s137, %s138
      %p150 = scmp.eq.s32.totalorder %s23, 1
      %p151 = por %p149, %p150
      %p153 = scmp.ne.s32.totalorder %s138, %s152
      %p154 = scmp.eq.s32.totalorder %s23, 0
      %p155 = por %p153, %p154
      %s157 = sadd.s32 %s156, 1
      %p160 = scmp.eq.s32.totalorder %s17, 1
      %p161 = scmp.ne.s32.totalorder %s156, %s158
      %p162 = scmp.eq.s32.totalorder %s17, 0
      %p163 = por %p161, %p162
      %p164 = scmp.ne.s32.totalorder %s156, %s158
      %p165 = scmp.eq.s32.totalorder %s22, 1
      %p166 = por %p164, %p165
      %p167 = scmp.ne.s32.totalorder %s158, %s159
      %p168 = scmp.eq.s32.totalorder %s22, 0
      %p169 = por %p167, %p168
      %p170 = scmp.ne.s32.totalorder %s158, %s159
      %p171 = scmp.eq.s32.totalorder %s23, 1
      %p172 = por %p170, %p171
      %p174 = scmp.ne.s32.totalorder %s159, %s173
      %p175 = scmp.eq.s32.totalorder %s23, 0
      %p176 = por %p174, %p175
      %s177 = ssub.s32 %s17, %s24
      %p178 = scmp.eq.s32.totalorder %s177, 0
      %s180 = sadd.s32 %s179, 1
      %s181 = scalar_select %p178, %s179, %s180
      %p184 = pneg %p178
      %p185 = scmp.eq.s32.totalorder %s17, 1
      %p186 = por %p184, %p185
      %p187 = scmp.ne.s32.totalorder %s179, %s182
      %p188 = scmp.eq.s32.totalorder %s17, 0
      %p189 = por %p187, %p188
      %p190 = scmp.ne.s32.totalorder %s179, %s182
      %p191 = scmp.eq.s32.totalorder %s22, 1
      %p192 = por %p190, %p191
      %p193 = scmp.ne.s32.totalorder %s182, %s183
      %p194 = scmp.eq.s32.totalorder %s22, 0
      %p195 = por %p193, %p194
      %p196 = scmp.ne.s32.totalorder %s182, %s183
      %p197 = scmp.eq.s32.totalorder %s23, 1
      %p198 = por %p196, %p197
      %p200 = scmp.ne.s32.totalorder %s183, %s199
      %p201 = scmp.eq.s32.totalorder %s23, 0
      %p202 = por %p200, %p201
      %p203 = scmp.le.s32.totalorder 1, %s17
      %p204 = scmp.lt.s32.totalorder %s17, 3
      %p205 = pnand %p203, %p204
      %p206 = pneg %p205
      // Predicated region
      $region9: #{tpu_custom_call.1} parent=5 // pred_check
        _
      $region10: #{tpu_custom_call.1} parent=5 // pred_check_branch
        %208 = sbr.rel (%p205) target = $region12
      $region11: #{tpu_custom_call.1} parent=5 // pred_region
        %s209 = ssub.s32 %s17, 1
        // Predicated region
        $region13: #{tpu_custom_call.1} parent=11 // pred_check
          %p210 = pneg %p64
        $region14: #{tpu_custom_call.1} parent=11 // pred_check_branch
          %212 = sbr.rel (%p210) target = $region16
        $region15: #{tpu_custom_call.1} parent=11 // pred_region
          _
        $region16: #{tpu_custom_call.1} parent=11 // pred_fallthru
          _
        // Predicated region
        $region17: #{tpu_custom_call.1} parent=11 // pred_check
          %p213 = pneg %p85
        $region18: #{tpu_custom_call.1} parent=11 // pred_check_branch
          %215 = sbr.rel (%p213) target = $region20
        $region19: #{tpu_custom_call.1} parent=11 // pred_region
          _
        $region20: #{tpu_custom_call.1} parent=11 // pred_fallthru
          _
        // Predicated region
        $region21: #{tpu_custom_call.1} parent=11 // pred_check
          %p216 = pneg %p106
        $region22: #{tpu_custom_call.1} parent=11 // pred_check_branch
          %218 = sbr.rel (%p216) target = $region24
        $region23: #{tpu_custom_call.1} parent=11 // pred_region
          %220 = vsyncadd [#allocation5], 0
          %s221 = sshll.u32 %s3, 4
          %s222 = int_to_ptr.hbm [resolvable:$true] %s221
          %s223 = sshll.u32 [#allocation4], 4
          %s224 = int_to_ptr.vmem [resolvable:$true] %s223
          %229 = dma.hbm_to_vmem [thread:$0]  %s222, 512, %s224, [#allocation5], 64, 64, 4
        $region24: #{tpu_custom_call.1} parent=11 // pred_fallthru
          _
        // Predicated region
        $region25: #{tpu_custom_call.1} parent=11 // pred_check
          %p230 = pneg %p127
        $region26: #{tpu_custom_call.1} parent=11 // pred_check_branch
          %232 = sbr.rel (%p230) target = $region28
        $region27: #{tpu_custom_call.1} parent=11 // pred_region
          _
        $region28: #{tpu_custom_call.1} parent=11 // pred_fallthru
          _
        // Predicated region
        $region29: #{tpu_custom_call.1} parent=11 // pred_check
          %p233 = pneg %p148
        $region30: #{tpu_custom_call.1} parent=11 // pred_check_branch
          %235 = sbr.rel (%p233) target = $region32
        $region31: #{tpu_custom_call.1} parent=11 // pred_region
          _
        $region32: #{tpu_custom_call.1} parent=11 // pred_fallthru
          _
        // Predicated region
        $region33: #{tpu_custom_call.1} parent=11 // pred_check
          %p236 = pneg %p169
        $region34: #{tpu_custom_call.1} parent=11 // pred_check_branch
          %238 = sbr.rel (%p236) target = $region36
        $region35: #{tpu_custom_call.1} parent=11 // pred_region
          _
        $region36: #{tpu_custom_call.1} parent=11 // pred_fallthru
          _
      $region12: #{tpu_custom_call.1} parent=5 // pred_fallthru
        _
      %p239 = scmp.lt.s32.totalorder %s17, 2
      // Predicated region
      $region37: #{tpu_custom_call.1} parent=5 // pred_check
        %p240 = pneg %p239
      $region38: #{tpu_custom_call.1} parent=5 // pred_check_branch
        %242 = sbr.rel (%p240) target = $region40
      $region39: #{tpu_custom_call.1} parent=5 // pred_region
        // Predicated region
        $region41: #{tpu_custom_call.1} parent=39 // pred_check
          %p243 = pneg %p37
        $region42: #{tpu_custom_call.1} parent=39 // pred_check_branch
          %245 = sbr.rel (%p243) target = $region44
        $region43: #{tpu_custom_call.1} parent=39 // pred_region
          %s246 = sand.u32 %s27, 1
          %s247 = scalar_lea.sflag [#allocation3], %s246
          %s248 = sand.u32 %s27, 1
          %s249 = smul.addr %s248, 32
          %s250 = scalar_lea.vmem [#allocation2], %s249
          %s251 = smul.u32 4, %s17
          %253 = vsyncadd %s247, 0
          %s254 = smul.addr %s251, 8
          %s255 = scalar_lea.hbm %s0, %s254
          %s256 = sshll.u32 %s255, 4
          %s257 = int_to_ptr.hbm [resolvable:$true] %s256
          %s258 = sshll.u32 %s250, 4
          %s259 = int_to_ptr.vmem [resolvable:$true] %s258
          %264 = dma.hbm_to_vmem [thread:$0]  %s257, 512, %s259, %s247, 128, 128, 8
        $region44: #{tpu_custom_call.1} parent=39 // pred_fallthru
          _
      $region40: #{tpu_custom_call.1} parent=5 // pred_fallthru
        _
      %p265 = scmp.le.s32.totalorder 1, %s17
      %p266 = scmp.lt.s32.totalorder %s17, 3
      %p267 = pnand %p265, %p266
      %p268 = pneg %p267
      // Predicated region
      $region45: #{tpu_custom_call.1} parent=5 // pred_check
        _
      $region46: #{tpu_custom_call.1} parent=5 // pred_check_branch
        %270 = sbr.rel (%p267) target = $region48
      $region47: #{tpu_custom_call.1} parent=5 // pred_region
        %s271 = ssub.s32 %s17, 1
        %s272 = sand.u32 %s30, 1
        %s273 = scalar_lea.sflag [#allocation3], %s272
        %s274 = sand.u32 %s30, 1
        %s275 = smul.addr %s274, 32
        %s276 = scalar_lea.vmem [#allocation2], %s275
        // Predicated region
        $region49: #{tpu_custom_call.1} parent=47 // pred_check
          %p277 = pneg %p43
        $region50: #{tpu_custom_call.1} parent=47 // pred_check_branch
          %279 = sbr.rel (%p277) target = $region52
        $region51: #{tpu_custom_call.1} parent=47 // pred_region
          %281 = dma.done %s273, 512
        $region52: #{tpu_custom_call.1} parent=47 // pred_fallthru
          _
        // Predicated region
        $region53: #{tpu_custom_call.1} parent=47 // pred_check
          %p282 = pneg %p106
        $region54: #{tpu_custom_call.1} parent=47 // pred_check_branch
          %284 = sbr.rel (%p282) target = $region56
        $region55: #{tpu_custom_call.1} parent=47 // pred_region
          %286 = dma.done [#allocation5], 512
        $region56: #{tpu_custom_call.1} parent=47 // pred_fallthru
          _
        %s287 = sand.u32 %s30, 1
        %s288 = scalar_lea.sflag [#allocation3], %s287
        %s289 = sand.u32 %s30, 1
        %s290 = smul.addr %s289, 32
        %s291 = scalar_lea.vmem [#allocation2], %s290
        %p292 = pneg %p43
        %p293 = pneg %p40
        %p294 = pneg %p64
        %p295 = pneg %p61
        %p296 = pneg %p85
        %p297 = pneg %p82
        %p298 = pneg %p106
        %p299 = pneg %p103
        %p300 = pneg %p127
        %p301 = pneg %p124
        %p302 = pneg %p148
        %p303 = pneg %p145
        %p304 = pneg %p169
        %p305 = pneg %p166
        %p306 = pneg %p195
        %p307 = pneg %p192
        %s308 = smul.u32 4, %s22
        %p309 = scmp.lt.s32.totalorder %s308, 7
        %s310 = scalar_select %p309, %s308, 7
        %s311 = smul.addr %s310, 8
        %s312 = scalar_lea.vmem %s7, %s311
        %s313 = smul.u32 4, %s22
        %s314 = smul.u32 4, %s22
        %p315 = scmp.lt.s32.totalorder %s314, 7
        %s316 = scalar_select %p315, %s314, 7
        %s317 = smul.addr %s316, 8
        %s318 = scalar_lea.vmem %s7, %s317
        %s319 = smul.u32 4, %s22
        %v321 = vld [vmem:[%s276] sm:$0xff]
        %v322 = vld [vmem:[%s276 + $0x8] sm:$0xff]
        %v323 = vld [vmem:[%s276 + $0x10] sm:$0xff]
        %v324 = vld [vmem:[%s276 + $0x18] sm:$0xff]
        %vm325 = vcmask 523264
        %v326 = vsel %vm325, %v321, 0.0
        %327 = vadd.xlane.f32.xlu0 %v326
        %v328 = vpop.xlane.xlu0 %327
        %v329 = vsel %vm325, %v322, 0.0
        %330 = vadd.xlane.f32.xlu0 %v329
        %v331 = vpop.xlane.xlu0 %330
        %v332 = vsel %vm325, %v323, 0.0
        %333 = vadd.xlane.f32.xlu0 %v332
        %v334 = vpop.xlane.xlu0 %333
        %v335 = vsel %vm325, %v324, 0.0
        %336 = vadd.xlane.f32.xlu0 %v335
        %v337 = vpop.xlane.xlu0 %336
        %v338 = vrcp.pop 64.0
        %v339 = vmul.f32 64.0, %v338
        %v340 = vsub.f32 1.0, %v339
        %v341 = vmul.f32 %v338, %v340
        %v342 = vadd.f32 %v338, %v341
        %vm343 = vweird.f32 %v338
        %v344 = vsel %vm343, %v338, %v342
        %v345 = vmul.f32 %v328, %v344
        %v346 = vmul.f32 %v331, %v344
        %v347 = vmul.f32 %v334, %v344
        %v348 = vmul.f32 %v337, %v344
        %v349 = vsub.f32 %v321, %v345
        %v350 = vsub.f32 %v322, %v346
        %v351 = vsub.f32 %v323, %v347
        %v352 = vsub.f32 %v324, %v348
        %v353 = vmul.f32 %v349, %v349
        %v354 = vmul.f32 %v350, %v350
        %v355 = vmul.f32 %v351, %v351
        %v356 = vmul.f32 %v352, %v352
        %v357 = vsel %vm325, %v353, 0.0
        %358 = vadd.xlane.f32.xlu0 %v357
        %v359 = vpop.xlane.xlu0 %358
        %v360 = vsel %vm325, %v354, 0.0
        %361 = vadd.xlane.f32.xlu0 %v360
        %v362 = vpop.xlane.xlu0 %361
        %v363 = vsel %vm325, %v355, 0.0
        %364 = vadd.xlane.f32.xlu0 %v363
        %v365 = vpop.xlane.xlu0 %364
        %v366 = vsel %vm325, %v356, 0.0
        %367 = vadd.xlane.f32.xlu0 %v366
        %v368 = vpop.xlane.xlu0 %367
        %v369 = vmul.f32 %v359, %v344
        %v370 = vmul.f32 %v362, %v344
        %v371 = vmul.f32 %v365, %v344
        %v372 = vmul.f32 %v368, %v344
        %v373 = vadd.f32 %v369, 1e-05
        %v374 = vadd.f32 %v370, 1e-05
        %v375 = vadd.f32 %v371, 1e-05
        %v376 = vadd.f32 %v372, 1e-05
        %v377 = vrsqrt.pop %v373
        %v378 = vmul.f32 %v377, %v373
        %v379 = vmul.f32 %v378, %v377
        %v380 = vmul.f32 0.5, %v379
        %v381 = vsub.f32 1.5, %v380
        %v382 = vmul.f32 %v377, %v381
        %vm383 = vweird.f32 %v373
        %vm384 = vweird.f32 %v377
        %vm385 = vmor %vm383, %vm384
        %v386 = vsel %vm385, %v377, %v382
        %v387 = vrsqrt.pop %v374
        %v388 = vmul.f32 %v387, %v374
        %v389 = vmul.f32 %v388, %v387
        %v390 = vmul.f32 0.5, %v389
        %v391 = vsub.f32 1.5, %v390
        %v392 = vmul.f32 %v387, %v391
        %vm393 = vweird.f32 %v374
        %vm394 = vweird.f32 %v387
        %vm395 = vmor %vm393, %vm394
        %v396 = vsel %vm395, %v387, %v392
        %v397 = vrsqrt.pop %v375
        %v398 = vmul.f32 %v397, %v375
        %v399 = vmul.f32 %v398, %v397
        %v400 = vmul.f32 0.5, %v399
        %v401 = vsub.f32 1.5, %v400
        %v402 = vmul.f32 %v397, %v401
        %vm403 = vweird.f32 %v375
        %vm404 = vweird.f32 %v397
        %vm405 = vmor %vm403, %vm404
        %v406 = vsel %vm405, %v397, %v402
        %v407 = vrsqrt.pop %v376
        %v408 = vmul.f32 %v407, %v376
        %v409 = vmul.f32 %v408, %v407
        %v410 = vmul.f32 0.5, %v409
        %v411 = vsub.f32 1.5, %v410
        %v412 = vmul.f32 %v407, %v411
        %vm413 = vweird.f32 %v376
        %vm414 = vweird.f32 %v407
        %vm415 = vmor %vm413, %vm414
        %v416 = vsel %vm415, %v407, %v412
        %v417 = vmul.f32 %v349, %v386
        %v418 = vmul.f32 %v350, %v396
        %v419 = vmul.f32 %v351, %v406
        %v420 = vmul.f32 %v352, %v416
        %v421 = vpack.c.bf16 %v418, %v417
        %v422 = vpack.c.bf16 %v420, %v419
        %v423 = vld [vmem:[%s1] sm:$0xf]
        %v424 = vld [vmem:[%s1 + $0x4] sm:$0xf]
        %v425 = vld [vmem:[%s1 + $0x8] sm:$0xf]
        %v426 = vld [vmem:[%s1 + $0xc] sm:$0xf]
        %v427 = vld [vmem:[%s1 + $0x10] sm:$0xf]
        %v428 = vld [vmem:[%s1 + $0x14] sm:$0xf]
        %v429 = vld [vmem:[%s1 + $0x18] sm:$0xf]
        %v430 = vld [vmem:[%s1 + $0x1c] sm:$0xf]
        %v431 = vld [vmem:[%s2] sm:$0x1]
        %v433 = vperm.slane %v431, 0
        %v443 = vunpack.c.l.b16 %v423
        %v444 = vunpack.c.l.b16 %v424
        %v445 = vunpack.c.l.b16 %v425
        %v446 = vunpack.c.l.b16 %v426
        %v447 = vunpack.c.l.b16 %v427
        %v448 = vunpack.c.l.b16 %v428
        %v449 = vunpack.c.l.b16 %v429
        %v450 = vunpack.c.l.b16 %v430
        %v451 = vpack.c.b16 %v444, %v443
        %v452 = vpack.c.b16 %v446, %v445
        %v453 = vpack.c.b16 %v448, %v447
        %v454 = vpack.c.b16 %v450, %v449
        %v460 = vsel %vm325, %v421, 0
        %v463 = vsel %vm325, %v422, 0
        %465 = vmatpush.bf16.msra.mxu0 0
        %466 = vmatpush.bf16.msra.mxu0 0
        %467 = vmatpush.bf16.msra.mxu0 0
        %468 = vmatpush.bf16.msra.mxu0 0
        %469 = vmatpush.bf16.msra.mxu0 %v454
        %470 = vmatpush.bf16.msra.mxu0 %v453
        %471 = vmatpush.bf16.msra.mxu0 %v452
        %472 = vmatpush.bf16.msra.mxu0 %v451
        %473 = vmatmul.bf16.gmra.mxu0 %v460
        %v474 = vpop.f32.mrf.mxu0
        %v475 = vadd.f32 %v433, %v474
        %v476 = vpop.f32.mrf.mxu0
        %v477 = vadd.f32 %v433, %v476
        %478 = vmatmul.bf16.gmra.mxu0 %v463
        %v479 = vpop.f32.mrf.mxu0
        %v480 = vadd.f32 %v433, %v479
        %v481 = vpop.f32.mrf.mxu0
        %v482 = vadd.f32 %v433, %v481
        %483 = vdwg.mxu0
        %v484 = vmax.f32 %v475, 0.0
        %v485 = vmax.f32 %v477, 0.0
        %v486 = vmax.f32 %v480, 0.0
        %v487 = vmax.f32 %v482, 0.0
        %v488 = vpack.c.bf16 %v485, %v484
        %v489 = vpack.c.bf16 %v487, %v486
        %v490 = vld [vmem:[#allocation4] sm:$0xf]
        %v491 = vld [vmem:[#allocation4 + $0x4] sm:$0xf]
        %v492 = vld [vmem:[#allocation4 + $0x8] sm:$0xf]
        %v493 = vld [vmem:[#allocation4 + $0xc] sm:$0xf]
        %v494 = vld [vmem:[#allocation4 + $0x10] sm:$0xf]
        %v495 = vld [vmem:[#allocation4 + $0x14] sm:$0xf]
        %v496 = vld [vmem:[#allocation4 + $0x18] sm:$0xf]
        %v497 = vld [vmem:[#allocation4 + $0x1c] sm:$0xf]
        %v498 = vld [vmem:[%s4] sm:$0x1]
        %v500 = vperm.slane %v498, 0
        %v510 = vunpack.c.l.b16 %v490
        %v511 = vunpack.c.l.b16 %v491
        %v512 = vunpack.c.l.b16 %v492
        %v513 = vunpack.c.l.b16 %v493
        %v514 = vunpack.c.l.b16 %v494
        %v515 = vunpack.c.l.b16 %v495
        %v516 = vunpack.c.l.b16 %v496
        %v517 = vunpack.c.l.b16 %v497
        %v518 = vpack.c.b16 %v511, %v510
        %v519 = vpack.c.b16 %v513, %v512
        %v520 = vpack.c.b16 %v515, %v514
        %v521 = vpack.c.b16 %v517, %v516
        %v527 = vsel %vm325, %v488, 0
        %v530 = vsel %vm325, %v489, 0
        %532 = vmatpush.bf16.msra.mxu0 0
        %533 = vmatpush.bf16.msra.mxu0 0
        %534 = vmatpush.bf16.msra.mxu0 0
        %535 = vmatpush.bf16.msra.mxu0 0
        %536 = vmatpush.bf16.msra.mxu0 %v521
        %537 = vmatpush.bf16.msra.mxu0 %v520
        %538 = vmatpush.bf16.msra.mxu0 %v519
        %539 = vmatpush.bf16.msra.mxu0 %v518
        %540 = vmatmul.bf16.gmra.mxu0 %v527
        %v541 = vpop.f32.mrf.mxu0
        %v542 = vadd.f32 %v500, %v541
        %v543 = vpop.f32.mrf.mxu0
        %v544 = vadd.f32 %v500, %v543
        %545 = vmatmul.bf16.gmra.mxu0 %v530
        %v546 = vpop.f32.mrf.mxu0
        %v547 = vadd.f32 %v500, %v546
        %v548 = vpop.f32.mrf.mxu0
        %v549 = vadd.f32 %v500, %v548
        %550 = vdwg.mxu0
        %v551 = vmax.f32 %v542, 0.0
        %v552 = vmax.f32 %v544, 0.0
        %v553 = vmax.f32 %v547, 0.0
        %v554 = vmax.f32 %v549, 0.0
        %v555 = vpack.c.bf16 %v552, %v551
        %v556 = vpack.c.bf16 %v554, %v553
        %v557 = vld [vmem:[%s5] sm:$0xf]
        %v558 = vld [vmem:[%s5 + $0x4] sm:$0xf]
        %v559 = vld [vmem:[%s5 + $0x8] sm:$0xf]
        %v560 = vld [vmem:[%s5 + $0xc] sm:$0xf]
        %v561 = vld [vmem:[%s5 + $0x10] sm:$0xf]
        %v562 = vld [vmem:[%s5 + $0x14] sm:$0xf]
        %v563 = vld [vmem:[%s5 + $0x18] sm:$0xf]
        %v564 = vld [vmem:[%s5 + $0x1c] sm:$0xf]
        %v565 = vld [vmem:[%s6] sm:$0x1]
        %v567 = vperm.slane %v565, 0
        %v577 = vunpack.c.l.b16 %v557
        %v578 = vunpack.c.l.b16 %v558
        %v579 = vunpack.c.l.b16 %v559
        %v580 = vunpack.c.l.b16 %v560
        %v581 = vunpack.c.l.b16 %v561
        %v582 = vunpack.c.l.b16 %v562
        %v583 = vunpack.c.l.b16 %v563
        %v584 = vunpack.c.l.b16 %v564
        %v585 = vpack.c.b16 %v578, %v577
        %v586 = vpack.c.b16 %v580, %v579
        %v587 = vpack.c.b16 %v582, %v581
        %v588 = vpack.c.b16 %v584, %v583
        %v594 = vsel %vm325, %v555, 0
        %v597 = vsel %vm325, %v556, 0
        %599 = vmatpush.bf16.msra.mxu0 0
        %600 = vmatpush.bf16.msra.mxu0 0
        %601 = vmatpush.bf16.msra.mxu0 0
        %602 = vmatpush.bf16.msra.mxu0 0
        %603 = vmatpush.bf16.msra.mxu0 %v588
        %604 = vmatpush.bf16.msra.mxu0 %v587
        %605 = vmatpush.bf16.msra.mxu0 %v586
        %606 = vmatpush.bf16.msra.mxu0 %v585
        %607 = vmatmul.bf16.gmra.mxu0 %v594
        %v608 = vpop.f32.mrf.mxu0
        %v609 = vadd.f32 %v567, %v608
        %v610 = vpop.f32.mrf.mxu0
        %v611 = vadd.f32 %v567, %v610
        %612 = vmatmul.bf16.gmra.mxu0 %v597
        %v613 = vpop.f32.mrf.mxu0
        %v614 = vadd.f32 %v567, %v613
        %v615 = vpop.f32.mrf.mxu0
        %v616 = vadd.f32 %v567, %v615
        %617 = vdwg.mxu0
        %vm618 = vcmask 31744
        %619 = vst.msk [vmem:[%s318] sm:$0xff] %vm618, %v609
        %620 = vst.msk [vmem:[%s318 + $0x8] sm:$0xff] %vm618, %v611
        %621 = vst.msk [vmem:[%s318 + $0x10] sm:$0xff] %vm618, %v614
        %622 = vst.msk [vmem:[%s318 + $0x18] sm:$0xff] %vm618, %v616
        %s623 = smul.u32 4, %s22
        %p624 = scmp.lt.s32.totalorder %s623, 7
        %s625 = scalar_select %p624, %s623, 7
        %s626 = smul.addr %s625, 8
        %s627 = scalar_lea.vmem %s7, %s626
        // Predicated region
        $region57: #{tpu_custom_call.1} parent=47 // pred_check
          %p628 = pneg %p192
        $region58: #{tpu_custom_call.1} parent=47 // pred_check_branch
          %630 = sbr.rel (%p628) target = $region60
        $region59: #{tpu_custom_call.1} parent=47 // pred_region
          %s631 = smul.u32 4, %s22
        $region60: #{tpu_custom_call.1} parent=47 // pred_fallthru
          _
      $region48: #{tpu_custom_call.1} parent=5 // pred_fallthru
        _
      %p632 = scmp.le.s32.totalorder 2, %s17
      // Predicated region
      $region61: #{tpu_custom_call.1} parent=5 // pred_check
        %p633 = pneg %p632
      $region62: #{tpu_custom_call.1} parent=5 // pred_check_branch
        %635 = sbr.rel (%p633) target = $region64
      $region63: #{tpu_custom_call.1} parent=5 // pred_region
        %s636 = ssub.s32 %s17, 2
        // Predicated region
        $region65: #{tpu_custom_call.1} parent=63 // pred_check
          %p637 = pneg %p198
        $region66: #{tpu_custom_call.1} parent=63 // pred_check_branch
          %639 = sbr.rel (%p637) target = $region68
        $region67: #{tpu_custom_call.1} parent=63 // pred_region
          %s640 = smul.u32 4, %s23
          %p641 = scmp.lt.s32.totalorder %s640, 7
          %s642 = scalar_select %p641, %s640, 7
          %s643 = smul.addr %s642, 8
          %s644 = scalar_lea.vmem %s7, %s643
        $region68: #{tpu_custom_call.1} parent=63 // pred_fallthru
          _
      $region64: #{tpu_custom_call.1} parent=5 // pred_fallthru
        _
    $region6: #{tpu_custom_call.1} parent=1 // loop_footer
      %s21 = sadd.s32 1, %s17
    $region7: #{tpu_custom_call.1} parent=1 // loop_footer_branch
      %16 = sbr.rel target = $region3
    $region8: #{tpu_custom_call.1} parent=1 // loop_exit
      _
    %645 = vsyncpa [#allocation3], 1
    %s646 = scalar_lea.sflag [#allocation3], 1
    %647 = vsyncpa %s646, 1
    %648 = vsyncpa [#allocation5], 1

</llo_original>
